<compile_context>
chip_gen: v6e
topology: v6e:2x2x1
jax: 0.10.0
libtpu: 0.0.40
codegen_flags: <defaults>
</compile_context>

<pallas_src>
import functools

import jax
import jax.numpy as jnp
from jax import lax
from jax.experimental import pallas as pl
from jax.experimental.pallas import tpu as pltpu

LANE = 128            # TPU lane width: lane dims padded to a multiple of this
SUBLANE = 8           # sublane granularity for f32 tiles
MAX_BATCH_TILE = 128  # max sequences packed into one sublane tile


def _round_up(x, m):
    return ((x + m - 1) // m) * m


def _lti_chunk_kernel(x0_ref, akT_ref, gT_ref, hT_ref, fT_ref,
                      aktT_ref, ftT_ref, u_ref, y_ref, xf_ref, x_sc):
    """One grid step = K timesteps for one batch tile.

    Grid = (batch_tiles [parallel], time_chunks [arbitrary]).
    x_sc carries the state across time chunks; re-initialized from x0 at
    chunk 0 of every batch tile.
    """
    t = pl.program_id(1)

    @pl.when(t == 0)
    def _():
        x_sc[...] = x0_ref[...]

    x = x_sc[...]          # state at the START of this chunk  (BT, SL)
    u = u_ref[...]         # lane-dense packed inputs of this chunk (BT, ULp)

    # Input-driven contributions: independent of the carried state, so they
    # are not on the serial dependency chain.
    y_u = jnp.dot(u, hT_ref[...], preferred_element_type=jnp.float32)
    x_u = jnp.dot(u, fT_ref[...], preferred_element_type=jnp.float32)

    # Outputs of the K timesteps of this chunk (lane-dense, time-major).
    y_ref[...] = jnp.dot(x, gT_ref[...], preferred_element_type=jnp.float32) + y_u

    # The only matmul on the serial chain: propagate the state K steps.
    x_sc[...] = jnp.dot(x, akT_ref[...], preferred_element_type=jnp.float32) + x_u

    # Exact final state after T (not T_pad) steps: the tail operators encode
    # the R <= K real steps of the last chunk.
    @pl.when(t == pl.num_programs(1) - 1)
    def _():
        xf_ref[...] = (
            jnp.dot(x, aktT_ref[...], preferred_element_type=jnp.float32)
            + jnp.dot(u, ftT_ref[...], preferred_element_type=jnp.float32))


def _blocked_operators(A, B, C, K, R):
    """Blocked K-step operators (float32), transposed and tile-padded.

    With row-vector states x (batch rows) and lane-dense input chunks u
    (time-major, width K*I):
        y_chunk = x @ G^T + u @ H^T            (width K*O, time-major)
        x_next  = x @ (A^K)^T + u @ F^T
        x_final = x @ (A^R)^T + u @ F_tail^T   (R real steps in last chunk)
    """
    S = A.shape[0]
    I = B.shape[1]
    O = C.shape[0]
    f32 = jnp.float32

    # A powers P[p] = A^p, p = 0..K
    def body(p_prev, _):
        p_new = A @ p_prev
        return p_new, p_new

    _, p_tail = lax.scan(body, jnp.eye(S, dtype=f32), None, length=K)
    P = jnp.concatenate([jnp.eye(S, dtype=f32)[None], p_tail], axis=0)  # (K+1,S,S)

    # Markov parameters M[d] = C A^d B
    M = jnp.einsum('os,dst,ti->doi', C, P[:K], B)              # (K, O, I)
    # G[j] = C A^(j+1)
    G = jnp.einsum('os,dst->dot', C, P[1:K + 1])               # (K, O, S)
    # H[j, m] = M[j - m] for m <= j else 0     -> (K*O, K*I)
    d = jnp.arange(K)[:, None] - jnp.arange(K)[None, :]
    Hb = jnp.where((d >= 0)[:, :, None, None], M[jnp.clip(d, 0, K - 1)], 0.0)
    H = Hb.transpose(0, 2, 1, 3).reshape(K * O, K * I)
    Gm = G.reshape(K * O, S)
    # F[:, m*I:(m+1)*I] = A^(K-1-m) B
    Fb = jnp.einsum('dst,ti->dsi', P[K - 1 - jnp.arange(K)], B)  # (K, S, I)
    F = Fb.transpose(1, 0, 2).reshape(S, K * I)
    Ak = P[K]

    # Tail operators: only R real steps happen in the last chunk.
    Atail = P[R]
    exps = jnp.clip(R - 1 - jnp.arange(K), 0, K)
    Ftb = jnp.einsum('dst,ti->dsi', P[exps], B)
    Ftb = Ftb * (jnp.arange(K) < R)[:, None, None]
    Ftail = Ftb.transpose(1, 0, 2).reshape(S, K * I)

    # Pad into MXU-friendly tiles.
    SL = _round_up(S, LANE)
    ULp = _round_up(K * I, LANE)
    YLp = _round_up(K * O, LANE)

    def tile(mat, rows, cols):
        out = jnp.zeros((rows, cols), f32)
        return out.at[:mat.shape[0], :mat.shape[1]].set(mat)

    akT = tile(Ak.T, SL, SL)
    gT = tile(Gm.T, SL, YLp)
    hT = tile(H.T, ULp, YLp)
    fT = tile(F.T, ULp, SL)
    aktT = tile(Atail.T, SL, SL)
    ftT = tile(Ftail.T, ULp, SL)
    return akT, gT, hT, fT, aktT, ftT, SL, ULp, YLp


@functools.partial(jax.jit, static_argnames=('time_chunk',))
def lti_forward_sequence(A, B, C, x0, u_seq, *, time_chunk=128):
    """Run the LTINetwork recurrence over whole sequences in one pallas_call.

    Args:
      A: (S, S), B: (S, I), C: (O, S)   model parameters
      x0: (batch, S)                    initial states (reset_state values)
      u_seq: (batch, T, I)              input sequences
    Returns:
      y_seq: (batch, T, O)   y_seq[:, t] = C x_{t+1}
      x_final: (batch, S)    state after T updates
    """
    f32 = jnp.float32
    A = A.astype(f32)
    B = B.astype(f32)
    C = C.astype(f32)
    S = A.shape[0]
    I = B.shape[1]
    O = C.shape[0]
    batch, T, _ = u_seq.shape

    # Keep a chunk's lane footprint bounded if I/O are large.
    K = max(8, min(time_chunk, max(1, 512 // max(I, O))))
    n_chunks = pl.cdiv(T, K)
    T_pad = n_chunks * K
    R = T - (n_chunks - 1) * K           # real steps in the last chunk

    akT, gT, hT, fT, aktT, ftT, SL, ULp, YLp = _blocked_operators(A, B, C, K, R)

    # Batch tiling along sublanes (fills the MXU M dimension).
    BT = min(_round_up(batch, SUBLANE), MAX_BATCH_TILE)
    batch_pad = _round_up(batch, BT)
    n_btiles = batch_pad // BT

    # Lane-dense packing of inputs: chunk t of row b occupies lanes
    # [t*ULp, t*ULp + K*I) in time-major order (I contiguous per step).
    u_full = jnp.zeros((batch_pad, T_pad, I), f32).at[:batch, :T, :].set(
        u_seq.astype(f32))
    u_chunks = u_full.reshape(batch_pad, n_chunks, K * I)
    if ULp > K * I:
        u_chunks = jnp.pad(u_chunks, ((0, 0), (0, 0), (0, ULp - K * I)))
    u_packed = u_chunks.reshape(batch_pad, n_chunks * ULp)

    x0_tile = jnp.zeros((batch_pad, SL), f32).at[:batch, :S].set(x0.astype(f32))

    wspec = lambda shape: pl.BlockSpec(shape, lambda b, t: (0, 0))

    y_packed, xf = pl.pallas_call(
        _lti_chunk_kernel,
        grid_spec=pltpu.PrefetchScalarGridSpec(
            num_scalar_prefetch=0,
            grid=(n_btiles, n_chunks),
            in_specs=[
                pl.BlockSpec((BT, SL), lambda b, t: (b, 0)),    # x0
                wspec((SL, SL)),                                # (A^K)^T
                wspec((SL, YLp)),                               # G^T
                wspec((ULp, YLp)),                              # H^T
                wspec((ULp, SL)),                               # F^T
                wspec((SL, SL)),                                # (A^R)^T (tail)
                wspec((ULp, SL)),                               # F_tail^T
                pl.BlockSpec((BT, ULp), lambda b, t: (b, t)),   # u chunk
            ],
            out_specs=(
                pl.BlockSpec((BT, YLp), lambda b, t: (b, t)),   # y chunk
                pl.BlockSpec((BT, SL), lambda b, t: (b, 0)),    # x_final
            ),
            scratch_shapes=[pltpu.VMEM((BT, SL), f32)],
        ),
        out_shape=(
            jax.ShapeDtypeStruct((batch_pad, n_chunks * YLp), f32),
            jax.ShapeDtypeStruct((batch_pad, SL), f32),
        ),
        # Time axis is the serial recurrence; batch tiles are independent
        # (lets v7x shard them across its two TensorCores).
        compiler_params=pltpu.CompilerParams(
            dimension_semantics=("parallel", "arbitrary")),
    )(x0_tile, akT, gT, hT, fT, aktT, ftT, u_packed)

    y_chunks = y_packed.reshape(batch_pad, n_chunks, YLp)[:, :, :K * O]
    y_seq = y_chunks.reshape(batch_pad, T_pad, O)[:batch, :T, :]
    x_final = xf[:batch, :S]
    return y_seq, x_final


def _reference(A, B, C, x0, u_seq):
    """Pure-JAX per-step reference mirroring the PyTorch module's forward."""
    def step(x, u):
        x = x @ A.T + u @ B.T
        return x, x @ C.T

    xf, ys = lax.scan(step, x0, jnp.swapaxes(u_seq, 0, 1))
    return jnp.swapaxes(ys, 0, 1), xf


if __name__ == "__main__":
    key = jax.random.PRNGKey(0)
    k_b, k_u, k_x0, k_a2, k_b2, k_c2, k_u2, k_x02 = jax.random.split(key, 8)

    # ---- Config 1: module defaults (S=2, I=O=1), T not a multiple of 128 ----
    n_states, n_inputs, n_outputs = 2, 1, 1
    batch, T = 3, 300

    # Parameter init mirroring LTINetwork.__init__
    A = jnp.eye(n_states, dtype=jnp.float32)
    B = 0.1 * jax.random.normal(k_b, (n_states, n_inputs), dtype=jnp.float32)
    C = jnp.zeros((n_outputs, n_states), jnp.float32).at[0, 0].set(1.0)

    x0 = jax.random.normal(k_x0, (batch, n_states), dtype=jnp.float32)
    u_seq = jax.random.normal(k_u, (batch, T, n_inputs), dtype=jnp.float32)

    y_seq, x_final = lti_forward_sequence(A, B, C, x0, u_seq)
    jax.block_until_ready((y_seq, x_final))

    y_ref, x_ref = jax.jit(_reference)(A, B, C, x0, u_seq)
    assert y_seq.shape == (batch, T, n_outputs)
    assert x_final.shape == (batch, n_states)
    err_y = float(jnp.abs(y_seq - y_ref).max())
    err_x = float(jnp.abs(x_final - x_ref).max())
    assert err_y < 1e-3, err_y
    assert err_x < 1e-3, err_x

    # ---- Config 2: non-identity (stable) A, wider I/O, exercises A powers ----
    S2, I2, O2 = 3, 2, 2
    batch2, T2 = 5, 200
    A2 = 0.8 * jnp.eye(S2, dtype=jnp.float32) + \
        0.05 * jax.random.normal(k_a2, (S2, S2), dtype=jnp.float32)
    B2 = 0.1 * jax.random.normal(k_b2, (S2, I2), dtype=jnp.float32)
    C2 = jax.random.normal(k_c2, (O2, S2), dtype=jnp.float32)
    x02 = jax.random.normal(k_x02, (batch2, S2), dtype=jnp.float32)
    u2 = jax.random.normal(k_u2, (batch2, T2, I2), dtype=jnp.float32)

    y2, xf2 = lti_forward_sequence(A2, B2, C2, x02, u2)
    jax.block_until_ready((y2, xf2))
    y2_ref, xf2_ref = jax.jit(_reference)(A2, B2, C2, x02, u2)
    err_y2 = float(jnp.abs(y2 - y2_ref).max())
    err_x2 = float(jnp.abs(xf2 - xf2_ref).max())
    assert err_y2 < 1e-3, err_y2
    assert err_x2 < 1e-3, err_x2

    print("KERNEL_OK")
</pallas_src>

<mosaic_0001>
module attributes {stable_mosaic.version = 11 : i64} {
  func.func @_lti_chunk_kernel(%arg0: i32, %arg1: i32, %arg2: memref<8x128xf32, #tpu.memory_space<vmem>>, %arg3: memref<128x128xf32, #tpu.memory_space<vmem>>, %arg4: memref<128x128xf32, #tpu.memory_space<vmem>>, %arg5: memref<128x128xf32, #tpu.memory_space<vmem>>, %arg6: memref<128x128xf32, #tpu.memory_space<vmem>>, %arg7: memref<128x128xf32, #tpu.memory_space<vmem>>, %arg8: memref<128x128xf32, #tpu.memory_space<vmem>>, %arg9: memref<8x128xf32, #tpu.memory_space<vmem>>, %arg10: memref<8x128xf32, #tpu.memory_space<vmem>>, %arg11: memref<8x128xf32, #tpu.memory_space<vmem>>, %arg12: memref<8x128xf32, #tpu.memory_space<vmem>>) attributes {dimension_semantics = [#tpu.dimension_semantics<parallel>, #tpu.dimension_semantics<arbitrary>], iteration_bounds = array<i64: 1, 3>, scalar_prefetch = 0 : i64, scratch_operands = 1 : i64, tpu.core_type = #tpu.core_type<tc>, window_params = [{transform_indices = @transform_0, window_bounds = array<i64: 8, 128>}, {pipeline_mode = #tpu.pipeline_mode<synchronous>, transform_indices = @transform_1, window_bounds = array<i64: 128, 128>}, {pipeline_mode = #tpu.pipeline_mode<synchronous>, transform_indices = @transform_2, window_bounds = array<i64: 128, 128>}, {pipeline_mode = #tpu.pipeline_mode<synchronous>, transform_indices = @transform_3, window_bounds = array<i64: 128, 128>}, {pipeline_mode = #tpu.pipeline_mode<synchronous>, transform_indices = @transform_4, window_bounds = array<i64: 128, 128>}, {pipeline_mode = #tpu.pipeline_mode<synchronous>, transform_indices = @transform_5, window_bounds = array<i64: 128, 128>}, {pipeline_mode = #tpu.pipeline_mode<synchronous>, transform_indices = @transform_6, window_bounds = array<i64: 128, 128>}, {transform_indices = @transform_7, window_bounds = array<i64: 8, 128>}, {transform_indices = @transform_8, window_bounds = array<i64: 8, 128>}, {transform_indices = @transform_9, window_bounds = array<i64: 8, 128>}]} {
    %c0_i32 = arith.constant 0 : i32
    %0 = arith.cmpi eq, %arg1, %c0_i32 : i32
    %1 = arith.extui %0 : i1 to i32
    %c0_i32_0 = arith.constant 0 : i32
    %2 = arith.cmpi ne, %1, %c0_i32_0 : i32
    scf.if %2 {
      %c0_20 = arith.constant 0 : index
      %c0_21 = arith.constant 0 : index
      %20 = vector.load %arg2[%c0_20, %c0_21] : memref<8x128xf32, #tpu.memory_space<vmem>>, vector<8x128xf32>
      %c0_22 = arith.constant 0 : index
      %c0_23 = arith.constant 0 : index
      %21 = vector.load %arg12[%c0_22, %c0_23] : memref<8x128xf32, #tpu.memory_space<vmem>>, vector<8x128xf32>
      tpu.vector_store %arg12[%c0_22, %c0_23], %20 {strides = array<i32>} : memref<8x128xf32, #tpu.memory_space<vmem>>, vector<8x128xf32>,
    } else {
    }
    %c0 = arith.constant 0 : index
    %c0_1 = arith.constant 0 : index
    %3 = vector.load %arg12[%c0, %c0_1] : memref<8x128xf32, #tpu.memory_space<vmem>>, vector<8x128xf32>
    %c0_2 = arith.constant 0 : index
    %c0_3 = arith.constant 0 : index
    %4 = vector.load %arg9[%c0_2, %c0_3] : memref<8x128xf32, #tpu.memory_space<vmem>>, vector<8x128xf32>
    %c0_4 = arith.constant 0 : index
    %c0_5 = arith.constant 0 : index
    %5 = vector.load %arg5[%c0_4, %c0_5] : memref<128x128xf32, #tpu.memory_space<vmem>>, vector<128x128xf32>
    %cst = arith.constant dense<0.000000e+00> : vector<8x128xf32>
    %6 = tpu.matmul %4, %5, %cst {dimension_numbers = #tpu.dot_dimension_numbers<[1], [0], [0], [1], [0, 0, 1, 1], [], []>} : vector<8x128xf32>, vector<128x128xf32>, vector<8x128xf32> -> vector<8x128xf32>
    %c0_6 = arith.constant 0 : index
    %c0_7 = arith.constant 0 : index
    %7 = vector.load %arg6[%c0_6, %c0_7] : memref<128x128xf32, #tpu.memory_space<vmem>>, vector<128x128xf32>
    %cst_8 = arith.constant dense<0.000000e+00> : vector<8x128xf32>
    %8 = tpu.matmul %4, %7, %cst_8 {dimension_numbers = #tpu.dot_dimension_numbers<[1], [0], [0], [1], [0, 0, 1, 1], [], []>} : vector<8x128xf32>, vector<128x128xf32>, vector<8x128xf32> -> vector<8x128xf32>
    %c0_9 = arith.constant 0 : index
    %c0_10 = arith.constant 0 : index
    %9 = vector.load %arg4[%c0_9, %c0_10] : memref<128x128xf32, #tpu.memory_space<vmem>>, vector<128x128xf32>
    %cst_11 = arith.constant dense<0.000000e+00> : vector<8x128xf32>
    %10 = tpu.matmul %3, %9, %cst_11 {dimension_numbers = #tpu.dot_dimension_numbers<[1], [0], [0], [1], [0, 0, 1, 1], [], []>} : vector<8x128xf32>, vector<128x128xf32>, vector<8x128xf32> -> vector<8x128xf32>
    %11 = arith.addf %10, %6 : vector<8x128xf32>
    %c0_12 = arith.constant 0 : index
    %c0_13 = arith.constant 0 : index
    %12 = vector.load %arg10[%c0_12, %c0_13] : memref<8x128xf32, #tpu.memory_space<vmem>>, vector<8x128xf32>
    tpu.vector_store %arg10[%c0_12, %c0_13], %11 {strides = array<i32>} : memref<8x128xf32, #tpu.memory_space<vmem>>, vector<8x128xf32>,
    %c0_14 = arith.constant 0 : index
    %c0_15 = arith.constant 0 : index
    %13 = vector.load %arg3[%c0_14, %c0_15] : memref<128x128xf32, #tpu.memory_space<vmem>>, vector<128x128xf32>
    %cst_16 = arith.constant dense<0.000000e+00> : vector<8x128xf32>
    %14 = tpu.matmul %3, %13, %cst_16 {dimension_numbers = #tpu.dot_dimension_numbers<[1], [0], [0], [1], [0, 0, 1, 1], [], []>} : vector<8x128xf32>, vector<128x128xf32>, vector<8x128xf32> -> vector<8x128xf32>
    %15 = arith.addf %14, %8 : vector<8x128xf32>
    %c0_17 = arith.constant 0 : index
    %c0_18 = arith.constant 0 : index
    %16 = vector.load %arg12[%c0_17, %c0_18] : memref<8x128xf32, #tpu.memory_space<vmem>>, vector<8x128xf32>
    tpu.vector_store %arg12[%c0_17, %c0_18], %15 {strides = array<i32>} : memref<8x128xf32, #tpu.memory_space<vmem>>, vector<8x128xf32>,
    %c2_i32 = arith.constant 2 : i32
    %17 = arith.cmpi eq, %arg1, %c2_i32 : i32
    %18 = arith.extui %17 : i1 to i32
    %c0_i32_19 = arith.constant 0 : i32
    %19 = arith.cmpi ne, %18, %c0_i32_19 : i32
    scf.if %19 {
      %c0_20 = arith.constant 0 : index
      %c0_21 = arith.constant 0 : index
      %20 = vector.load %arg7[%c0_20, %c0_21] : memref<128x128xf32, #tpu.memory_space<vmem>>, vector<128x128xf32>
      %cst_22 = arith.constant dense<0.000000e+00> : vector<8x128xf32>
      %21 = tpu.matmul %3, %20, %cst_22 {dimension_numbers = #tpu.dot_dimension_numbers<[1], [0], [0], [1], [0, 0, 1, 1], [], []>} : vector<8x128xf32>, vector<128x128xf32>, vector<8x128xf32> -> vector<8x128xf32>
      %c0_23 = arith.constant 0 : index
      %c0_24 = arith.constant 0 : index
      %22 = vector.load %arg8[%c0_23, %c0_24] : memref<128x128xf32, #tpu.memory_space<vmem>>, vector<128x128xf32>
      %cst_25 = arith.constant dense<0.000000e+00> : vector<8x128xf32>
      %23 = tpu.matmul %4, %22, %cst_25 {dimension_numbers = #tpu.dot_dimension_numbers<[1], [0], [0], [1], [0, 0, 1, 1], [], []>} : vector<8x128xf32>, vector<128x128xf32>, vector<8x128xf32> -> vector<8x128xf32>
      %24 = arith.addf %21, %23 : vector<8x128xf32>
      %c0_26 = arith.constant 0 : index
      %c0_27 = arith.constant 0 : index
      %25 = vector.load %arg11[%c0_26, %c0_27] : memref<8x128xf32, #tpu.memory_space<vmem>>, vector<8x128xf32>
      tpu.vector_store %arg11[%c0_26, %c0_27], %24 {strides = array<i32>} : memref<8x128xf32, #tpu.memory_space<vmem>>, vector<8x128xf32>,
    } else {
    }
    return
  }
  func.func @transform_0(%arg0: i32, %arg1: i32) -> (i32, i32) {
    %c0_i32 = arith.constant 0 : i32
    %c0_i32_0 = arith.constant 0 : i32
    return %arg0, %c0_i32 : i32, i32
  }
  func.func @transform_1(%arg0: i32, %arg1: i32) -> (i32, i32) {
    %c0_i32 = arith.constant 0 : i32
    %c0_i32_0 = arith.constant 0 : i32
    %c0_i32_1 = arith.constant 0 : i32
    return %c0_i32, %c0_i32_0 : i32, i32
  }
  func.func @transform_2(%arg0: i32, %arg1: i32) -> (i32, i32) {
    %c0_i32 = arith.constant 0 : i32
    %c0_i32_0 = arith.constant 0 : i32
    %c0_i32_1 = arith.constant 0 : i32
    return %c0_i32, %c0_i32_0 : i32, i32
  }
  func.func @transform_3(%arg0: i32, %arg1: i32) -> (i32, i32) {
    %c0_i32 = arith.constant 0 : i32
    %c0_i32_0 = arith.constant 0 : i32
    %c0_i32_1 = arith.constant 0 : i32
    return %c0_i32, %c0_i32_0 : i32, i32
  }
  func.func @transform_4(%arg0: i32, %arg1: i32) -> (i32, i32) {
    %c0_i32 = arith.constant 0 : i32
    %c0_i32_0 = arith.constant 0 : i32
    %c0_i32_1 = arith.constant 0 : i32
    return %c0_i32, %c0_i32_0 : i32, i32
  }
  func.func @transform_5(%arg0: i32, %arg1: i32) -> (i32, i32) {
    %c0_i32 = arith.constant 0 : i32
    %c0_i32_0 = arith.constant 0 : i32
    %c0_i32_1 = arith.constant 0 : i32
    return %c0_i32, %c0_i32_0 : i32, i32
  }
  func.func @transform_6(%arg0: i32, %arg1: i32) -> (i32, i32) {
    %c0_i32 = arith.constant 0 : i32
    %c0_i32_0 = arith.constant 0 : i32
    %c0_i32_1 = arith.constant 0 : i32
    return %c0_i32, %c0_i32_0 : i32, i32
  }
  func.func @transform_7(%arg0: i32, %arg1: i32) -> (i32, i32) {
    %c0_i32 = arith.constant 0 : i32
    return %arg0, %arg1 : i32, i32
  }
  func.func @transform_8(%arg0: i32, %arg1: i32) -> (i32, i32) {
    %c0_i32 = arith.constant 0 : i32
    return %arg0, %arg1 : i32, i32
  }
  func.func @transform_9(%arg0: i32, %arg1: i32) -> (i32, i32) {
    %c0_i32 = arith.constant 0 : i32
    %c0_i32_0 = arith.constant 0 : i32
    return %arg0, %c0_i32 : i32, i32
  }
}

</mosaic_0001>

<llo_original>
// kernel: custom-call.6
$region0: #{custom-call.6}
  %s0 = inlined_call_operand.vmem [shape: f32[128,2,2], index: 0, kind: output, shape index: {}]

// kernel: lti_forward_sequence.1
$region0: #{lti_forward_sequence.1}
  #allocation0 [shape = 'u32[]', space=smem, size = 0x4, offset = 0x4, fixed_abs, tag = 'smem constant byte address 0x4 - core index']
  #allocation1 [shape = 'u32[144,128]{1,0:T(1,128)}', space=vmem, size = 0x12000, scoped, tag = 'internal scratch']
  #allocation2 [shape = 'f32[8,128]{1,0:T(8,128)}', space=vmem, size = 0x1000, scoped, tag = 'scratch operand']
  %s0 = inlined_call_operand.vmem [shape: f32[8,128], index: 0, kind: input, shape index: {}]
  %s1 = inlined_call_operand.vmem [shape: f32[128,128], index: 1, kind: input, shape index: {}]
  %s2 = inlined_call_operand.vmem [shape: f32[128,128], index: 2, kind: input, shape index: {}]
  %s3 = inlined_call_operand.vmem [shape: f32[128,128], index: 3, kind: input, shape index: {}]
  %s4 = inlined_call_operand.vmem [shape: f32[128,128], index: 4, kind: input, shape index: {}]
  %s5 = inlined_call_operand.vmem [shape: f32[128,128], index: 5, kind: input, shape index: {}]
  %s6 = inlined_call_operand.vmem [shape: f32[128,128], index: 6, kind: input, shape index: {}]
  %s7 = inlined_call_operand.vmem [shape: f32[8,384], index: 7, kind: input, shape index: {}]
  %s8 = inlined_call_operand.vmem [shape: f32[8,384], index: 8, kind: output, shape index: {0}]
  %s9 = inlined_call_operand.vmem [shape: f32[8,128], index: 9, kind: output, shape index: {1}]
  %10 = xla_tuple %s8, %s9
  %s11 = sld [smem:[#allocation0]]
  $region81: #{lti_forward_sequence.1} parent=0
    _
  %s13 = ssub.s32 1, %s11
  %s14 = scalar_select 0, %s13, %s11
  loop: start=0, step=1, limit=5
  $region2: #{lti_forward_sequence.1} parent=0 // loop_pre_header
    _
  $region3: #{lti_forward_sequence.1} parent=0 // loop_header
    %s16 = sphi 0, %s20
    %p17 = scmp.ge.s32.totalorder %s16, 5
    %s23 = sphi 0, %s35
    %s24 = sphi 0, %s31
    %s25 = sphi 0, %s23
    %s26 = sphi 0, %s24
    %s27 = sphi 0, %s25
    %s28 = sphi 0, %s26
    %s38 = sphi 0, %s40
    %s41 = sphi 0, %s38
    %s42 = sphi 0, %s41
    %s58 = sphi 0, %s42
    %s62 = sphi 0, %s62
    %s64 = sphi 0, %s62
    %s65 = sphi 0, %s64
    %s79 = sphi 0, %s65
    %s83 = sphi 0, %s83
    %s85 = sphi 0, %s83
    %s86 = sphi 0, %s85
    %s100 = sphi 0, %s86
    %s104 = sphi 0, %s104
    %s106 = sphi 0, %s104
    %s107 = sphi 0, %s106
    %s121 = sphi 0, %s107
    %s125 = sphi 0, %s125
    %s127 = sphi 0, %s125
    %s128 = sphi 0, %s127
    %s142 = sphi 0, %s128
    %s146 = sphi 0, %s146
    %s148 = sphi 0, %s146
    %s149 = sphi 0, %s148
    %s163 = sphi 0, %s149
    %s167 = sphi 0, %s167
    %s169 = sphi 0, %s167
    %s170 = sphi 0, %s169
    %s184 = sphi 0, %s170
    %s192 = sphi 0, %s194
    %s195 = sphi 0, %s192
    %s196 = sphi 0, %s195
    %s212 = sphi 0, %s196
    %s220 = sphi 0, %s222
    %s223 = sphi 0, %s220
    %s224 = sphi 0, %s223
    %s240 = sphi 0, %s224
    %s246 = sphi 0, %s248
    %s249 = sphi 0, %s246
    %s250 = sphi 0, %s249
    %s266 = sphi 0, %s250
  $region4: #{lti_forward_sequence.1} parent=0 // loop_header_branch
    %19 = sbr.rel (%p17) target = $region8
  $region5: #{lti_forward_sequence.1} parent=0 // loop_body
    %s21 = ssub.s32 %s16, 1
    %s22 = ssub.s32 %s16, 2
    %s29 = sadd.s32 1, %s24
    %p30 = scmp.ge.s32.totalorder %s29, 3
    %s31 = scalar_select %p30, 0, %s29
    %s32 = sadd.s32 1, %s23
    %s33 = scalar_select %p30, %s32, %s23
    %p34 = scmp.ge.s32.totalorder %s33, 1
    %s35 = scalar_select %p34, 0, %s33
    %s36 = ssub.s32 %s23, %s35
    %p37 = scmp.eq.s32.totalorder %s36, 0
    %s39 = sadd.s32 %s38, 1
    %s40 = scalar_select %p37, %s38, %s39
    %p43 = pneg %p37
    %p44 = scmp.eq.s32.totalorder %s16, 2
    %p45 = por %p43, %p44
    %p46 = scmp.ne.s32.totalorder %s38, %s41
    %p47 = scmp.eq.s32.totalorder %s16, 0
    %p48 = por %p46, %p47
    %p49 = scmp.ne.s32.totalorder %s38, %s41
    %p50 = scmp.eq.s32.totalorder %s21, 2
    %p51 = por %p49, %p50
    %p52 = scmp.ne.s32.totalorder %s41, %s42
    %p53 = scmp.eq.s32.totalorder %s21, 0
    %p54 = por %p52, %p53
    %p55 = scmp.ne.s32.totalorder %s41, %s42
    %p56 = scmp.eq.s32.totalorder %s22, 2
    %p57 = por %p55, %p56
    %p59 = scmp.ne.s32.totalorder %s42, %s58
    %p60 = scmp.eq.s32.totalorder %s22, 0
    %p61 = por %p59, %p60
    %s63 = sadd.s32 %s62, 1
    %p66 = scmp.eq.s32.totalorder %s16, 2
    %p67 = scmp.ne.s32.totalorder %s62, %s64
    %p68 = scmp.eq.s32.totalorder %s16, 0
    %p69 = por %p67, %p68
    %p70 = scmp.ne.s32.totalorder %s62, %s64
    %p71 = scmp.eq.s32.totalorder %s21, 2
    %p72 = por %p70, %p71
    %p73 = scmp.ne.s32.totalorder %s64, %s65
    %p74 = scmp.eq.s32.totalorder %s21, 0
    %p75 = por %p73, %p74
    %p76 = scmp.ne.s32.totalorder %s64, %s65
    %p77 = scmp.eq.s32.totalorder %s22, 2
    %p78 = por %p76, %p77
    %p80 = scmp.ne.s32.totalorder %s65, %s79
    %p81 = scmp.eq.s32.totalorder %s22, 0
    %p82 = por %p80, %p81
    %s84 = sadd.s32 %s83, 1
    %p87 = scmp.eq.s32.totalorder %s16, 2
    %p88 = scmp.ne.s32.totalorder %s83, %s85
    %p89 = scmp.eq.s32.totalorder %s16, 0
    %p90 = por %p88, %p89
    %p91 = scmp.ne.s32.totalorder %s83, %s85
    %p92 = scmp.eq.s32.totalorder %s21, 2
    %p93 = por %p91, %p92
    %p94 = scmp.ne.s32.totalorder %s85, %s86
    %p95 = scmp.eq.s32.totalorder %s21, 0
    %p96 = por %p94, %p95
    %p97 = scmp.ne.s32.totalorder %s85, %s86
    %p98 = scmp.eq.s32.totalorder %s22, 2
    %p99 = por %p97, %p98
    %p101 = scmp.ne.s32.totalorder %s86, %s100
    %p102 = scmp.eq.s32.totalorder %s22, 0
    %p103 = por %p101, %p102
    %s105 = sadd.s32 %s104, 1
    %p108 = scmp.eq.s32.totalorder %s16, 2
    %p109 = scmp.ne.s32.totalorder %s104, %s106
    %p110 = scmp.eq.s32.totalorder %s16, 0
    %p111 = por %p109, %p110
    %p112 = scmp.ne.s32.totalorder %s104, %s106
    %p113 = scmp.eq.s32.totalorder %s21, 2
    %p114 = por %p112, %p113
    %p115 = scmp.ne.s32.totalorder %s106, %s107
    %p116 = scmp.eq.s32.totalorder %s21, 0
    %p117 = por %p115, %p116
    %p118 = scmp.ne.s32.totalorder %s106, %s107
    %p119 = scmp.eq.s32.totalorder %s22, 2
    %p120 = por %p118, %p119
    %p122 = scmp.ne.s32.totalorder %s107, %s121
    %p123 = scmp.eq.s32.totalorder %s22, 0
    %p124 = por %p122, %p123
    %s126 = sadd.s32 %s125, 1
    %p129 = scmp.eq.s32.totalorder %s16, 2
    %p130 = scmp.ne.s32.totalorder %s125, %s127
    %p131 = scmp.eq.s32.totalorder %s16, 0
    %p132 = por %p130, %p131
    %p133 = scmp.ne.s32.totalorder %s125, %s127
    %p134 = scmp.eq.s32.totalorder %s21, 2
    %p135 = por %p133, %p134
    %p136 = scmp.ne.s32.totalorder %s127, %s128
    %p137 = scmp.eq.s32.totalorder %s21, 0
    %p138 = por %p136, %p137
    %p139 = scmp.ne.s32.totalorder %s127, %s128
    %p140 = scmp.eq.s32.totalorder %s22, 2
    %p141 = por %p139, %p140
    %p143 = scmp.ne.s32.totalorder %s128, %s142
    %p144 = scmp.eq.s32.totalorder %s22, 0
    %p145 = por %p143, %p144
    %s147 = sadd.s32 %s146, 1
    %p150 = scmp.eq.s32.totalorder %s16, 2
    %p151 = scmp.ne.s32.totalorder %s146, %s148
    %p152 = scmp.eq.s32.totalorder %s16, 0
    %p153 = por %p151, %p152
    %p154 = scmp.ne.s32.totalorder %s146, %s148
    %p155 = scmp.eq.s32.totalorder %s21, 2
    %p156 = por %p154, %p155
    %p157 = scmp.ne.s32.totalorder %s148, %s149
    %p158 = scmp.eq.s32.totalorder %s21, 0
    %p159 = por %p157, %p158
    %p160 = scmp.ne.s32.totalorder %s148, %s149
    %p161 = scmp.eq.s32.totalorder %s22, 2
    %p162 = por %p160, %p161
    %p164 = scmp.ne.s32.totalorder %s149, %s163
    %p165 = scmp.eq.s32.totalorder %s22, 0
    %p166 = por %p164, %p165
    %s168 = sadd.s32 %s167, 1
    %p171 = scmp.eq.s32.totalorder %s16, 2
    %p172 = scmp.ne.s32.totalorder %s167, %s169
    %p173 = scmp.eq.s32.totalorder %s16, 0
    %p174 = por %p172, %p173
    %p175 = scmp.ne.s32.totalorder %s167, %s169
    %p176 = scmp.eq.s32.totalorder %s21, 2
    %p177 = por %p175, %p176
    %p178 = scmp.ne.s32.totalorder %s169, %s170
    %p179 = scmp.eq.s32.totalorder %s21, 0
    %p180 = por %p178, %p179
    %p181 = scmp.ne.s32.totalorder %s169, %s170
    %p182 = scmp.eq.s32.totalorder %s22, 2
    %p183 = por %p181, %p182
    %p185 = scmp.ne.s32.totalorder %s170, %s184
    %p186 = scmp.eq.s32.totalorder %s22, 0
    %p187 = por %p185, %p186
    %s188 = ssub.s32 %s23, %s35
    %s189 = ssub.s32 %s24, %s31
    %s190 = sor.u32 %s188, %s189
    %p191 = scmp.eq.s32.totalorder %s190, 0
    %s193 = sadd.s32 %s192, 1
    %s194 = scalar_select %p191, %s192, %s193
    %p197 = pneg %p191
    %p198 = scmp.eq.s32.totalorder %s16, 2
    %p199 = por %p197, %p198
    %p200 = scmp.ne.s32.totalorder %s192, %s195
    %p201 = scmp.eq.s32.totalorder %s16, 0
    %p202 = por %p200, %p201
    %p203 = scmp.ne.s32.totalorder %s192, %s195
    %p204 = scmp.eq.s32.totalorder %s21, 2
    %p205 = por %p203, %p204
    %p206 = scmp.ne.s32.totalorder %s195, %s196
    %p207 = scmp.eq.s32.totalorder %s21, 0
    %p208 = por %p206, %p207
    %p209 = scmp.ne.s32.totalorder %s195, %s196
    %p210 = scmp.eq.s32.totalorder %s22, 2
    %p211 = por %p209, %p210
    %p213 = scmp.ne.s32.totalorder %s196, %s212
    %p214 = scmp.eq.s32.totalorder %s22, 0
    %p215 = por %p213, %p214
    %s216 = ssub.s32 %s23, %s35
    %s217 = ssub.s32 %s24, %s31
    %s218 = sor.u32 %s216, %s217
    %p219 = scmp.eq.s32.totalorder %s218, 0
    %s221 = sadd.s32 %s220, 1
    %s222 = scalar_select %p219, %s220, %s221
    %p225 = pneg %p219
    %p226 = scmp.eq.s32.totalorder %s16, 2
    %p227 = por %p225, %p226
    %p228 = scmp.ne.s32.totalorder %s220, %s223
    %p229 = scmp.eq.s32.totalorder %s16, 0
    %p230 = por %p228, %p229
    %p231 = scmp.ne.s32.totalorder %s220, %s223
    %p232 = scmp.eq.s32.totalorder %s21, 2
    %p233 = por %p231, %p232
    %p234 = scmp.ne.s32.totalorder %s223, %s224
    %p235 = scmp.eq.s32.totalorder %s21, 0
    %p236 = por %p234, %p235
    %p237 = scmp.ne.s32.totalorder %s223, %s224
    %p238 = scmp.eq.s32.totalorder %s22, 2
    %p239 = por %p237, %p238
    %p241 = scmp.ne.s32.totalorder %s224, %s240
    %p242 = scmp.eq.s32.totalorder %s22, 0
    %p243 = por %p241, %p242
    %s244 = ssub.s32 %s23, %s35
    %p245 = scmp.eq.s32.totalorder %s244, 0
    %s247 = sadd.s32 %s246, 1
    %s248 = scalar_select %p245, %s246, %s247
    %p251 = pneg %p245
    %p252 = scmp.eq.s32.totalorder %s16, 2
    %p253 = por %p251, %p252
    %p254 = scmp.ne.s32.totalorder %s246, %s249
    %p255 = scmp.eq.s32.totalorder %s16, 0
    %p256 = por %p254, %p255
    %p257 = scmp.ne.s32.totalorder %s246, %s249
    %p258 = scmp.eq.s32.totalorder %s21, 2
    %p259 = por %p257, %p258
    %p260 = scmp.ne.s32.totalorder %s249, %s250
    %p261 = scmp.eq.s32.totalorder %s21, 0
    %p262 = por %p260, %p261
    %p263 = scmp.ne.s32.totalorder %s249, %s250
    %p264 = scmp.eq.s32.totalorder %s22, 2
    %p265 = por %p263, %p264
    %p267 = scmp.ne.s32.totalorder %s250, %s266
    %p268 = scmp.eq.s32.totalorder %s22, 0
    %p269 = por %p267, %p268
    %p270 = scmp.le.s32.totalorder 1, %s16
    %p271 = scmp.lt.s32.totalorder %s16, 4
    %p272 = pnand %p270, %p271
    %p273 = pneg %p272
    // Predicated region
    $region9: #{lti_forward_sequence.1} parent=5 // pred_check
      _
    $region10: #{lti_forward_sequence.1} parent=5 // pred_check_branch
      %275 = sbr.rel (%p272) target = $region12
    $region11: #{lti_forward_sequence.1} parent=5 // pred_region
      %s276 = ssub.s32 %s16, 1
      // Predicated region
      $region13: #{lti_forward_sequence.1} parent=11 // pred_check
        %p277 = pneg %p54
      $region14: #{lti_forward_sequence.1} parent=11 // pred_check_branch
        %279 = sbr.rel (%p277) target = $region16
      $region15: #{lti_forward_sequence.1} parent=11 // pred_region
        %p280 = scmp.lt.s32.totalorder %s25, 0
        %s281 = scalar_select %p280, %s25, 0
        %s282 = smul.addr %s281, 8
        %s283 = scalar_lea.vmem %s0, %s282
      $region16: #{lti_forward_sequence.1} parent=11 // pred_fallthru
        _
      // Predicated region
      $region17: #{lti_forward_sequence.1} parent=11 // pred_check
        %p284 = pneg %p75
      $region18: #{lti_forward_sequence.1} parent=11 // pred_check_branch
        %286 = sbr.rel (%p284) target = $region20
      $region19: #{lti_forward_sequence.1} parent=11 // pred_region
        _
      $region20: #{lti_forward_sequence.1} parent=11 // pred_fallthru
        _
      // Predicated region
      $region21: #{lti_forward_sequence.1} parent=11 // pred_check
        %p287 = pneg %p96
      $region22: #{lti_forward_sequence.1} parent=11 // pred_check_branch
        %289 = sbr.rel (%p287) target = $region24
      $region23: #{lti_forward_sequence.1} parent=11 // pred_region
        _
      $region24: #{lti_forward_sequence.1} parent=11 // pred_fallthru
        _
      // Predicated region
      $region25: #{lti_forward_sequence.1} parent=11 // pred_check
        %p290 = pneg %p117
      $region26: #{lti_forward_sequence.1} parent=11 // pred_check_branch
        %292 = sbr.rel (%p290) target = $region28
      $region27: #{lti_forward_sequence.1} parent=11 // pred_region
        _
      $region28: #{lti_forward_sequence.1} parent=11 // pred_fallthru
        _
      // Predicated region
      $region29: #{lti_forward_sequence.1} parent=11 // pred_check
        %p293 = pneg %p138
      $region30: #{lti_forward_sequence.1} parent=11 // pred_check_branch
        %295 = sbr.rel (%p293) target = $region32
      $region31: #{lti_forward_sequence.1} parent=11 // pred_region
        _
      $region32: #{lti_forward_sequence.1} parent=11 // pred_fallthru
        _
      // Predicated region
      $region33: #{lti_forward_sequence.1} parent=11 // pred_check
        %p296 = pneg %p159
      $region34: #{lti_forward_sequence.1} parent=11 // pred_check_branch
        %298 = sbr.rel (%p296) target = $region36
      $region35: #{lti_forward_sequence.1} parent=11 // pred_region
        _
      $region36: #{lti_forward_sequence.1} parent=11 // pred_fallthru
        _
      // Predicated region
      $region37: #{lti_forward_sequence.1} parent=11 // pred_check
        %p299 = pneg %p180
      $region38: #{lti_forward_sequence.1} parent=11 // pred_check_branch
        %301 = sbr.rel (%p299) target = $region40
      $region39: #{lti_forward_sequence.1} parent=11 // pred_region
        _
      $region40: #{lti_forward_sequence.1} parent=11 // pred_fallthru
        _
    $region12: #{lti_forward_sequence.1} parent=5 // pred_fallthru
      _
    %p302 = scmp.lt.s32.totalorder %s16, 3
    // Predicated region
    $region41: #{lti_forward_sequence.1} parent=5 // pred_check
      %p303 = pneg %p302
    $region42: #{lti_forward_sequence.1} parent=5 // pred_check_branch
      %305 = sbr.rel (%p303) target = $region44
    $region43: #{lti_forward_sequence.1} parent=5 // pred_region
      // Predicated region
      $region45: #{lti_forward_sequence.1} parent=43 // pred_check
        %p306 = pneg %p202
      $region46: #{lti_forward_sequence.1} parent=43 // pred_check_branch
        %308 = sbr.rel (%p306) target = $region48
      $region47: #{lti_forward_sequence.1} parent=43 // pred_region
        %p309 = scmp.lt.s32.totalorder %s23, 0
        %s310 = scalar_select %p309, %s23, 0
        %p311 = scmp.lt.s32.totalorder %s24, 2
        %s312 = scalar_select %p311, %s24, 2
        %s313 = smul.addr %s310, 3
        %s314 = sadd.s32 %s312, %s313
        %s315 = smul.addr %s314, 8
        %s316 = scalar_lea.vmem %s7, %s315
      $region48: #{lti_forward_sequence.1} parent=43 // pred_fallthru
        _
    $region44: #{lti_forward_sequence.1} parent=5 // pred_fallthru
      _
    %p317 = scmp.le.s32.totalorder 1, %s16
    %p318 = scmp.lt.s32.totalorder %s16, 4
    %p319 = pnand %p317, %p318
    %p320 = pneg %p319
    // Predicated region
    $region49: #{lti_forward_sequence.1} parent=5 // pred_check
      _
    $region50: #{lti_forward_sequence.1} parent=5 // pred_check_branch
      %322 = sbr.rel (%p319) target = $region52
    $region51: #{lti_forward_sequence.1} parent=5 // pred_region
      %s323 = ssub.s32 %s16, 1
      %p324 = scmp.lt.s32.totalorder %s25, 0
      %s325 = scalar_select %p324, %s25, 0
      %s326 = smul.addr %s325, 8
      %s327 = scalar_lea.vmem %s0, %s326
      %p328 = pneg %p54
      %p329 = pneg %p51
      %p330 = pneg %p75
      %p331 = pneg %p72
      %p332 = pneg %p96
      %p333 = pneg %p93
      %p334 = pneg %p117
      %p335 = pneg %p114
      %p336 = pneg %p138
      %p337 = pneg %p135
      %p338 = pneg %p159
      %p339 = pneg %p156
      %p340 = pneg %p180
      %p341 = pneg %p177
      %p342 = scmp.lt.s32.totalorder %s25, 0
      %s343 = scalar_select %p342, %s25, 0
      %p344 = scmp.lt.s32.totalorder %s26, 2
      %s345 = scalar_select %p344, %s26, 2
      %s346 = smul.addr %s343, 3
      %s347 = sadd.s32 %s345, %s346
      %s348 = smul.addr %s347, 8
      %s349 = scalar_lea.vmem %s7, %s348
      %p350 = pneg %p208
      %p351 = pneg %p205
      %p352 = pneg %p236
      %p353 = pneg %p233
      %p354 = scmp.lt.s32.totalorder %s25, 0
      %s355 = scalar_select %p354, %s25, 0
      %p356 = scmp.lt.s32.totalorder %s26, 2
      %s357 = scalar_select %p356, %s26, 2
      %s358 = smul.addr %s355, 3
      %s359 = sadd.s32 %s357, %s358
      %s360 = smul.addr %s359, 8
      %s361 = scalar_lea.vmem %s8, %s360
      %p362 = pneg %p262
      %p363 = pneg %p259
      %p364 = scmp.lt.s32.totalorder %s25, 0
      %s365 = scalar_select %p364, %s25, 0
      %s366 = smul.addr %s365, 8
      %s367 = scalar_lea.vmem %s9, %s366
      %p368 = scmp.lt.s32.totalorder %s25, 0
      %s369 = scalar_select %p368, %s25, 0
      %s370 = smul.addr %s369, 8
      %s371 = scalar_lea.vmem %s0, %s370
      %p372 = scmp.lt.s32.totalorder %s25, 0
      %s373 = scalar_select %p372, %s25, 0
      %p374 = scmp.lt.s32.totalorder %s26, 2
      %s375 = scalar_select %p374, %s26, 2
      %s376 = smul.addr %s373, 3
      %s377 = sadd.s32 %s375, %s376
      %s378 = smul.addr %s377, 8
      %s379 = scalar_lea.vmem %s7, %s378
      %p380 = scmp.lt.s32.totalorder %s25, 0
      %s381 = scalar_select %p380, %s25, 0
      %p382 = scmp.lt.s32.totalorder %s26, 2
      %s383 = scalar_select %p382, %s26, 2
      %s384 = smul.addr %s381, 3
      %s385 = sadd.s32 %s383, %s384
      %s386 = smul.addr %s385, 8
      %s387 = scalar_lea.vmem %s8, %s386
      %p388 = scmp.lt.s32.totalorder %s25, 0
      %s389 = scalar_select %p388, %s25, 0
      %s390 = smul.addr %s389, 8
      %s391 = scalar_lea.vmem %s9, %s390
      %p392 = scmp.eq.s32.totalorder %s26, 0
      // Predicated region
      $region53: #{lti_forward_sequence.1} parent=51 // pred_check
        %p393 = pneg %p392
      $region54: #{lti_forward_sequence.1} parent=51 // pred_check_branch
        %395 = sbr.rel (%p393) target = $region56
      $region55: #{lti_forward_sequence.1} parent=51 // pred_region
        %v396 = vld [vmem:[%s371] sm:$0xff]
        %397 = vst [vmem:[#allocation2] sm:$0xff] %v396
      $region56: #{lti_forward_sequence.1} parent=51 // pred_fallthru
        _
      %v398 = vld [vmem:[#allocation2] sm:$0xff]
      %v399 = vld [vmem:[%s379] sm:$0xff]
      %v400 = vld [vmem:[%s3] sm:$0xff]
      %v401 = vld [vmem:[%s3 + $0x8] sm:$0xff]
      %v402 = vld [vmem:[%s3 + $0x10] sm:$0xff]
      %v403 = vld [vmem:[%s3 + $0x18] sm:$0xff]
      %v404 = vld [vmem:[%s3 + $0x20] sm:$0xff]
      %v405 = vld [vmem:[%s3 + $0x28] sm:$0xff]
      %v406 = vld [vmem:[%s3 + $0x30] sm:$0xff]
      %v407 = vld [vmem:[%s3 + $0x38] sm:$0xff]
      %v408 = vld [vmem:[%s3 + $0x40] sm:$0xff]
      %v409 = vld [vmem:[%s3 + $0x48] sm:$0xff]
      %v410 = vld [vmem:[%s3 + $0x50] sm:$0xff]
      %v411 = vld [vmem:[%s3 + $0x58] sm:$0xff]
      %v412 = vld [vmem:[%s3 + $0x60] sm:$0xff]
      %v413 = vld [vmem:[%s3 + $0x68] sm:$0xff]
      %v414 = vld [vmem:[%s3 + $0x70] sm:$0xff]
      %v415 = vld [vmem:[%s3 + $0x78] sm:$0xff]
      %416 = vmatprep.subr.mxu0 0.0
      %417 = vmatpush1.msra.mxu0 %v415
      %418 = vmatprep.subr.mxu0 0.0
      %419 = vmatpush1.msra.mxu0 %v414
      %420 = vmatprep.subr.mxu0 0.0
      %421 = vmatpush1.msra.mxu0 %v413
      %422 = vmatprep.subr.mxu0 0.0
      %423 = vmatpush1.msra.mxu0 %v412
      %424 = vmatprep.subr.mxu0 0.0
      %425 = vmatpush1.msra.mxu0 %v411
      %426 = vmatprep.subr.mxu0 0.0
      %427 = vmatpush1.msra.mxu0 %v410
      %428 = vmatprep.subr.mxu0 0.0
      %429 = vmatpush1.msra.mxu0 %v409
      %430 = vmatprep.subr.mxu0 0.0
      %431 = vmatpush1.msra.mxu0 %v408
      %432 = vmatprep.subr.mxu0 0.0
      %433 = vmatpush1.msra.mxu0 %v407
      %434 = vmatprep.subr.mxu0 0.0
      %435 = vmatpush1.msra.mxu0 %v406
      %436 = vmatprep.subr.mxu0 0.0
      %437 = vmatpush1.msra.mxu0 %v405
      %438 = vmatprep.subr.mxu0 0.0
      %439 = vmatpush1.msra.mxu0 %v404
      %440 = vmatprep.subr.mxu0 0.0
      %441 = vmatpush1.msra.mxu0 %v403
      %442 = vmatprep.subr.mxu0 0.0
      %443 = vmatpush1.msra.mxu0 %v402
      %444 = vmatprep.subr.mxu0 0.0
      %445 = vmatpush1.msra.mxu0 %v401
      %446 = vmatprep.subr.mxu0 0.0
      %447 = vmatpush1.msra.mxu0 %v400
      %448 = vmatprep.subr.mxu0 0.0
      %449 = vmatpush2.msra.mxu0 0.0
      %450 = vmatprep.subr.mxu0 0.0
      %451 = vmatpush2.msra.mxu0 0.0
      %452 = vmatprep.subr.mxu0 0.0
      %453 = vmatpush2.msra.mxu0 0.0
      %454 = vmatprep.subr.mxu0 0.0
      %455 = vmatpush2.msra.mxu0 0.0
      %456 = vmatprep.subr.mxu0 0.0
      %457 = vmatpush2.msra.mxu0 0.0
      %458 = vmatprep.subr.mxu0 0.0
      %459 = vmatpush2.msra.mxu0 0.0
      %460 = vmatprep.subr.mxu0 0.0
      %461 = vmatpush2.msra.mxu0 0.0
      %462 = vmatprep.subr.mxu0 0.0
      %463 = vmatpush2.msra.mxu0 0.0
      %464 = vmatprep.subr.mxu0 0.0
      %465 = vmatpush2.msra.mxu0 0.0
      %466 = vmatprep.subr.mxu0 0.0
      %467 = vmatpush2.msra.mxu0 0.0
      %468 = vmatprep.subr.mxu0 0.0
      %469 = vmatpush2.msra.mxu0 0.0
      %470 = vmatprep.subr.mxu0 0.0
      %471 = vmatpush2.msra.mxu0 0.0
      %472 = vmatprep.subr.mxu0 0.0
      %473 = vmatpush2.msra.mxu0 0.0
      %474 = vmatprep.subr.mxu0 0.0
      %475 = vmatpush2.msra.mxu0 0.0
      %476 = vmatprep.subr.mxu0 0.0
      %477 = vmatpush2.msra.mxu0 0.0
      %478 = vmatprep.subr.mxu0 0.0
      %479 = vmatpush2.msra.mxu0 0.0
      %480 = vmatprep.mubr.f32.mxu0 0.0
      %481 = vmatmul.mubr.f32.gmra.mxu0 %v399
      %v482 = vpop.f32.mrf.mxu0
      %v483 = vadd.f32 0.0, %v482
      %v484 = vpop.f32.mrf.mxu0
      %485 = vdwg.mxu0
      %v486 = vld [vmem:[%s4] sm:$0xff]
      %v487 = vld [vmem:[%s4 + $0x8] sm:$0xff]
      %v488 = vld [vmem:[%s4 + $0x10] sm:$0xff]
      %v489 = vld [vmem:[%s4 + $0x18] sm:$0xff]
      %v490 = vld [vmem:[%s4 + $0x20] sm:$0xff]
      %v491 = vld [vmem:[%s4 + $0x28] sm:$0xff]
      %v492 = vld [vmem:[%s4 + $0x30] sm:$0xff]
      %v493 = vld [vmem:[%s4 + $0x38] sm:$0xff]
      %v494 = vld [vmem:[%s4 + $0x40] sm:$0xff]
      %v495 = vld [vmem:[%s4 + $0x48] sm:$0xff]
      %v496 = vld [vmem:[%s4 + $0x50] sm:$0xff]
      %v497 = vld [vmem:[%s4 + $0x58] sm:$0xff]
      %v498 = vld [vmem:[%s4 + $0x60] sm:$0xff]
      %v499 = vld [vmem:[%s4 + $0x68] sm:$0xff]
      %v500 = vld [vmem:[%s4 + $0x70] sm:$0xff]
      %v501 = vld [vmem:[%s4 + $0x78] sm:$0xff]
      %502 = vmatprep.subr.mxu0 0.0
      %503 = vmatpush1.msra.mxu0 %v501
      %504 = vmatprep.subr.mxu0 0.0
      %505 = vmatpush1.msra.mxu0 %v500
      %506 = vmatprep.subr.mxu0 0.0
      %507 = vmatpush1.msra.mxu0 %v499
      %508 = vmatprep.subr.mxu0 0.0
      %509 = vmatpush1.msra.mxu0 %v498
      %510 = vmatprep.subr.mxu0 0.0
      %511 = vmatpush1.msra.mxu0 %v497
      %512 = vmatprep.subr.mxu0 0.0
      %513 = vmatpush1.msra.mxu0 %v496
      %514 = vmatprep.subr.mxu0 0.0
      %515 = vmatpush1.msra.mxu0 %v495
      %516 = vmatprep.subr.mxu0 0.0
      %517 = vmatpush1.msra.mxu0 %v494
      %518 = vmatprep.subr.mxu0 0.0
      %519 = vmatpush1.msra.mxu0 %v493
      %520 = vmatprep.subr.mxu0 0.0
      %521 = vmatpush1.msra.mxu0 %v492
      %522 = vmatprep.subr.mxu0 0.0
      %523 = vmatpush1.msra.mxu0 %v491
      %524 = vmatprep.subr.mxu0 0.0
      %525 = vmatpush1.msra.mxu0 %v490
      %526 = vmatprep.subr.mxu0 0.0
      %527 = vmatpush1.msra.mxu0 %v489
      %528 = vmatprep.subr.mxu0 0.0
      %529 = vmatpush1.msra.mxu0 %v488
      %530 = vmatprep.subr.mxu0 0.0
      %531 = vmatpush1.msra.mxu0 %v487
      %532 = vmatprep.subr.mxu0 0.0
      %533 = vmatpush1.msra.mxu0 %v486
      %534 = vmatprep.subr.mxu0 0.0
      %535 = vmatpush2.msra.mxu0 0.0
      %536 = vmatprep.subr.mxu0 0.0
      %537 = vmatpush2.msra.mxu0 0.0
      %538 = vmatprep.subr.mxu0 0.0
      %539 = vmatpush2.msra.mxu0 0.0
      %540 = vmatprep.subr.mxu0 0.0
      %541 = vmatpush2.msra.mxu0 0.0
      %542 = vmatprep.subr.mxu0 0.0
      %543 = vmatpush2.msra.mxu0 0.0
      %544 = vmatprep.subr.mxu0 0.0
      %545 = vmatpush2.msra.mxu0 0.0
      %546 = vmatprep.subr.mxu0 0.0
      %547 = vmatpush2.msra.mxu0 0.0
      %548 = vmatprep.subr.mxu0 0.0
      %549 = vmatpush2.msra.mxu0 0.0
      %550 = vmatprep.subr.mxu0 0.0
      %551 = vmatpush2.msra.mxu0 0.0
      %552 = vmatprep.subr.mxu0 0.0
      %553 = vmatpush2.msra.mxu0 0.0
      %554 = vmatprep.subr.mxu0 0.0
      %555 = vmatpush2.msra.mxu0 0.0
      %556 = vmatprep.subr.mxu0 0.0
      %557 = vmatpush2.msra.mxu0 0.0
      %558 = vmatprep.subr.mxu0 0.0
      %559 = vmatpush2.msra.mxu0 0.0
      %560 = vmatprep.subr.mxu0 0.0
      %561 = vmatpush2.msra.mxu0 0.0
      %562 = vmatprep.subr.mxu0 0.0
      %563 = vmatpush2.msra.mxu0 0.0
      %564 = vmatprep.subr.mxu0 0.0
      %565 = vmatpush2.msra.mxu0 0.0
      %566 = vmatprep.mubr.f32.mxu0 0.0
      %567 = vmatmul.mubr.f32.gmra.mxu0 %v399
      %v568 = vpop.f32.mrf.mxu0
      %v569 = vadd.f32 0.0, %v568
      %v570 = vpop.f32.mrf.mxu0
      %571 = vdwg.mxu0
      %v572 = vld [vmem:[%s2] sm:$0xff]
      %v573 = vld [vmem:[%s2 + $0x8] sm:$0xff]
      %v574 = vld [vmem:[%s2 + $0x10] sm:$0xff]
      %v575 = vld [vmem:[%s2 + $0x18] sm:$0xff]
      %v576 = vld [vmem:[%s2 + $0x20] sm:$0xff]
      %v577 = vld [vmem:[%s2 + $0x28] sm:$0xff]
      %v578 = vld [vmem:[%s2 + $0x30] sm:$0xff]
      %v579 = vld [vmem:[%s2 + $0x38] sm:$0xff]
      %v580 = vld [vmem:[%s2 + $0x40] sm:$0xff]
      %v581 = vld [vmem:[%s2 + $0x48] sm:$0xff]
      %v582 = vld [vmem:[%s2 + $0x50] sm:$0xff]
      %v583 = vld [vmem:[%s2 + $0x58] sm:$0xff]
      %v584 = vld [vmem:[%s2 + $0x60] sm:$0xff]
      %v585 = vld [vmem:[%s2 + $0x68] sm:$0xff]
      %v586 = vld [vmem:[%s2 + $0x70] sm:$0xff]
      %v587 = vld [vmem:[%s2 + $0x78] sm:$0xff]
      %588 = vmatprep.subr.mxu0 0.0
      %589 = vmatpush1.msra.mxu0 %v587
      %590 = vmatprep.subr.mxu0 0.0
      %591 = vmatpush1.msra.mxu0 %v586
      %592 = vmatprep.subr.mxu0 0.0
      %593 = vmatpush1.msra.mxu0 %v585
      %594 = vmatprep.subr.mxu0 0.0
      %595 = vmatpush1.msra.mxu0 %v584
      %596 = vmatprep.subr.mxu0 0.0
      %597 = vmatpush1.msra.mxu0 %v583
      %598 = vmatprep.subr.mxu0 0.0
      %599 = vmatpush1.msra.mxu0 %v582
      %600 = vmatprep.subr.mxu0 0.0
      %601 = vmatpush1.msra.mxu0 %v581
      %602 = vmatprep.subr.mxu0 0.0
      %603 = vmatpush1.msra.mxu0 %v580
      %604 = vmatprep.subr.mxu0 0.0
      %605 = vmatpush1.msra.mxu0 %v579
      %606 = vmatprep.subr.mxu0 0.0
      %607 = vmatpush1.msra.mxu0 %v578
      %608 = vmatprep.subr.mxu0 0.0
      %609 = vmatpush1.msra.mxu0 %v577
      %610 = vmatprep.subr.mxu0 0.0
      %611 = vmatpush1.msra.mxu0 %v576
      %612 = vmatprep.subr.mxu0 0.0
      %613 = vmatpush1.msra.mxu0 %v575
      %614 = vmatprep.subr.mxu0 0.0
      %615 = vmatpush1.msra.mxu0 %v574
      %616 = vmatprep.subr.mxu0 0.0
      %617 = vmatpush1.msra.mxu0 %v573
      %618 = vmatprep.subr.mxu0 0.0
      %619 = vmatpush1.msra.mxu0 %v572
      %620 = vmatprep.subr.mxu0 0.0
      %621 = vmatpush2.msra.mxu0 0.0
      %622 = vmatprep.subr.mxu0 0.0
      %623 = vmatpush2.msra.mxu0 0.0
      %624 = vmatprep.subr.mxu0 0.0
      %625 = vmatpush2.msra.mxu0 0.0
      %626 = vmatprep.subr.mxu0 0.0
      %627 = vmatpush2.msra.mxu0 0.0
      %628 = vmatprep.subr.mxu0 0.0
      %629 = vmatpush2.msra.mxu0 0.0
      %630 = vmatprep.subr.mxu0 0.0
      %631 = vmatpush2.msra.mxu0 0.0
      %632 = vmatprep.subr.mxu0 0.0
      %633 = vmatpush2.msra.mxu0 0.0
      %634 = vmatprep.subr.mxu0 0.0
      %635 = vmatpush2.msra.mxu0 0.0
      %636 = vmatprep.subr.mxu0 0.0
      %637 = vmatpush2.msra.mxu0 0.0
      %638 = vmatprep.subr.mxu0 0.0
      %639 = vmatpush2.msra.mxu0 0.0
      %640 = vmatprep.subr.mxu0 0.0
      %641 = vmatpush2.msra.mxu0 0.0
      %642 = vmatprep.subr.mxu0 0.0
      %643 = vmatpush2.msra.mxu0 0.0
      %644 = vmatprep.subr.mxu0 0.0
      %645 = vmatpush2.msra.mxu0 0.0
      %646 = vmatprep.subr.mxu0 0.0
      %647 = vmatpush2.msra.mxu0 0.0
      %648 = vmatprep.subr.mxu0 0.0
      %649 = vmatpush2.msra.mxu0 0.0
      %650 = vmatprep.subr.mxu0 0.0
      %651 = vmatpush2.msra.mxu0 0.0
      %652 = vmatprep.mubr.f32.mxu0 0.0
      %653 = vmatmul.mubr.f32.gmra.mxu0 %v398
      %v654 = vpop.f32.mrf.mxu0
      %v655 = vadd.f32 %v483, %v654
      %v656 = vpop.f32.mrf.mxu0
      %657 = vdwg.mxu0
      %658 = vst [vmem:[%s387] sm:$0xff] %v655
      %v659 = vld [vmem:[%s1] sm:$0xff]
      %v660 = vld [vmem:[%s1 + $0x8] sm:$0xff]
      %v661 = vld [vmem:[%s1 + $0x10] sm:$0xff]
      %v662 = vld [vmem:[%s1 + $0x18] sm:$0xff]
      %v663 = vld [vmem:[%s1 + $0x20] sm:$0xff]
      %v664 = vld [vmem:[%s1 + $0x28] sm:$0xff]
      %v665 = vld [vmem:[%s1 + $0x30] sm:$0xff]
      %v666 = vld [vmem:[%s1 + $0x38] sm:$0xff]
      %v667 = vld [vmem:[%s1 + $0x40] sm:$0xff]
      %v668 = vld [vmem:[%s1 + $0x48] sm:$0xff]
      %v669 = vld [vmem:[%s1 + $0x50] sm:$0xff]
      %v670 = vld [vmem:[%s1 + $0x58] sm:$0xff]
      %v671 = vld [vmem:[%s1 + $0x60] sm:$0xff]
      %v672 = vld [vmem:[%s1 + $0x68] sm:$0xff]
      %v673 = vld [vmem:[%s1 + $0x70] sm:$0xff]
      %v674 = vld [vmem:[%s1 + $0x78] sm:$0xff]
      %675 = vmatprep.subr.mxu0 0.0
      %676 = vmatpush1.msra.mxu0 %v674
      %677 = vmatprep.subr.mxu0 0.0
      %678 = vmatpush1.msra.mxu0 %v673
      %679 = vmatprep.subr.mxu0 0.0
      %680 = vmatpush1.msra.mxu0 %v672
      %681 = vmatprep.subr.mxu0 0.0
      %682 = vmatpush1.msra.mxu0 %v671
      %683 = vmatprep.subr.mxu0 0.0
      %684 = vmatpush1.msra.mxu0 %v670
      %685 = vmatprep.subr.mxu0 0.0
      %686 = vmatpush1.msra.mxu0 %v669
      %687 = vmatprep.subr.mxu0 0.0
      %688 = vmatpush1.msra.mxu0 %v668
      %689 = vmatprep.subr.mxu0 0.0
      %690 = vmatpush1.msra.mxu0 %v667
      %691 = vmatprep.subr.mxu0 0.0
      %692 = vmatpush1.msra.mxu0 %v666
      %693 = vmatprep.subr.mxu0 0.0
      %694 = vmatpush1.msra.mxu0 %v665
      %695 = vmatprep.subr.mxu0 0.0
      %696 = vmatpush1.msra.mxu0 %v664
      %697 = vmatprep.subr.mxu0 0.0
      %698 = vmatpush1.msra.mxu0 %v663
      %699 = vmatprep.subr.mxu0 0.0
      %700 = vmatpush1.msra.mxu0 %v662
      %701 = vmatprep.subr.mxu0 0.0
      %702 = vmatpush1.msra.mxu0 %v661
      %703 = vmatprep.subr.mxu0 0.0
      %704 = vmatpush1.msra.mxu0 %v660
      %705 = vmatprep.subr.mxu0 0.0
      %706 = vmatpush1.msra.mxu0 %v659
      %707 = vmatprep.subr.mxu0 0.0
      %708 = vmatpush2.msra.mxu0 0.0
      %709 = vmatprep.subr.mxu0 0.0
      %710 = vmatpush2.msra.mxu0 0.0
      %711 = vmatprep.subr.mxu0 0.0
      %712 = vmatpush2.msra.mxu0 0.0
      %713 = vmatprep.subr.mxu0 0.0
      %714 = vmatpush2.msra.mxu0 0.0
      %715 = vmatprep.subr.mxu0 0.0
      %716 = vmatpush2.msra.mxu0 0.0
      %717 = vmatprep.subr.mxu0 0.0
      %718 = vmatpush2.msra.mxu0 0.0
      %719 = vmatprep.subr.mxu0 0.0
      %720 = vmatpush2.msra.mxu0 0.0
      %721 = vmatprep.subr.mxu0 0.0
      %722 = vmatpush2.msra.mxu0 0.0
      %723 = vmatprep.subr.mxu0 0.0
      %724 = vmatpush2.msra.mxu0 0.0
      %725 = vmatprep.subr.mxu0 0.0
      %726 = vmatpush2.msra.mxu0 0.0
      %727 = vmatprep.subr.mxu0 0.0
      %728 = vmatpush2.msra.mxu0 0.0
      %729 = vmatprep.subr.mxu0 0.0
      %730 = vmatpush2.msra.mxu0 0.0
      %731 = vmatprep.subr.mxu0 0.0
      %732 = vmatpush2.msra.mxu0 0.0
      %733 = vmatprep.subr.mxu0 0.0
      %734 = vmatpush2.msra.mxu0 0.0
      %735 = vmatprep.subr.mxu0 0.0
      %736 = vmatpush2.msra.mxu0 0.0
      %737 = vmatprep.subr.mxu0 0.0
      %738 = vmatpush2.msra.mxu0 0.0
      %739 = vmatprep.mubr.f32.mxu0 0.0
      %740 = vmatmul.mubr.f32.gmra.mxu0 %v398
      %v741 = vpop.f32.mrf.mxu0
      %v742 = vadd.f32 %v569, %v741
      %v743 = vpop.f32.mrf.mxu0
      %744 = vdwg.mxu0
      %745 = vst [vmem:[#allocation2] sm:$0xff] %v742
      %p746 = scmp.eq.s32.totalorder %s26, 2
      // Predicated region
      $region57: #{lti_forward_sequence.1} parent=51 // pred_check
        %p747 = pneg %p746
      $region58: #{lti_forward_sequence.1} parent=51 // pred_check_branch
        %749 = sbr.rel (%p747) target = $region60
      $region59: #{lti_forward_sequence.1} parent=51 // pred_region
        %v750 = vld [vmem:[%s5] sm:$0xff]
        %v751 = vld [vmem:[%s5 + $0x8] sm:$0xff]
        %v752 = vld [vmem:[%s5 + $0x10] sm:$0xff]
        %v753 = vld [vmem:[%s5 + $0x18] sm:$0xff]
        %v754 = vld [vmem:[%s5 + $0x20] sm:$0xff]
        %v755 = vld [vmem:[%s5 + $0x28] sm:$0xff]
        %v756 = vld [vmem:[%s5 + $0x30] sm:$0xff]
        %v757 = vld [vmem:[%s5 + $0x38] sm:$0xff]
        %v758 = vld [vmem:[%s5 + $0x40] sm:$0xff]
        %v759 = vld [vmem:[%s5 + $0x48] sm:$0xff]
        %v760 = vld [vmem:[%s5 + $0x50] sm:$0xff]
        %v761 = vld [vmem:[%s5 + $0x58] sm:$0xff]
        %v762 = vld [vmem:[%s5 + $0x60] sm:$0xff]
        %v763 = vld [vmem:[%s5 + $0x68] sm:$0xff]
        %v764 = vld [vmem:[%s5 + $0x70] sm:$0xff]
        %v765 = vld [vmem:[%s5 + $0x78] sm:$0xff]
        %v766 = vld [vmem:[%s6] sm:$0xff]
        %v767 = vld [vmem:[%s6 + $0x8] sm:$0xff]
        %v768 = vld [vmem:[%s6 + $0x10] sm:$0xff]
        %v769 = vld [vmem:[%s6 + $0x18] sm:$0xff]
        %v770 = vld [vmem:[%s6 + $0x20] sm:$0xff]
        %v771 = vld [vmem:[%s6 + $0x28] sm:$0xff]
        %v772 = vld [vmem:[%s6 + $0x30] sm:$0xff]
        %v773 = vld [vmem:[%s6 + $0x38] sm:$0xff]
        %v774 = vld [vmem:[%s6 + $0x40] sm:$0xff]
        %v775 = vld [vmem:[%s6 + $0x48] sm:$0xff]
        %v776 = vld [vmem:[%s6 + $0x50] sm:$0xff]
        %v777 = vld [vmem:[%s6 + $0x58] sm:$0xff]
        %v778 = vld [vmem:[%s6 + $0x60] sm:$0xff]
        %v779 = vld [vmem:[%s6 + $0x68] sm:$0xff]
        %v780 = vld [vmem:[%s6 + $0x70] sm:$0xff]
        %v781 = vld [vmem:[%s6 + $0x78] sm:$0xff]
        %782 = vmatprep.subr.mxu0 0.0
        %783 = vmatpush1.msra.mxu0 %v781
        %784 = vmatprep.subr.mxu0 0.0
        %785 = vmatpush1.msra.mxu0 %v780
        %786 = vmatprep.subr.mxu0 0.0
        %787 = vmatpush1.msra.mxu0 %v779
        %788 = vmatprep.subr.mxu0 0.0
        %789 = vmatpush1.msra.mxu0 %v778
        %790 = vmatprep.subr.mxu0 0.0
        %791 = vmatpush1.msra.mxu0 %v777
        %792 = vmatprep.subr.mxu0 0.0
        %793 = vmatpush1.msra.mxu0 %v776
        %794 = vmatprep.subr.mxu0 0.0
        %795 = vmatpush1.msra.mxu0 %v775
        %796 = vmatprep.subr.mxu0 0.0
        %797 = vmatpush1.msra.mxu0 %v774
        %798 = vmatprep.subr.mxu0 0.0
        %799 = vmatpush1.msra.mxu0 %v773
        %800 = vmatprep.subr.mxu0 0.0
        %801 = vmatpush1.msra.mxu0 %v772
        %802 = vmatprep.subr.mxu0 0.0
        %803 = vmatpush1.msra.mxu0 %v771
        %804 = vmatprep.subr.mxu0 0.0
        %805 = vmatpush1.msra.mxu0 %v770
        %806 = vmatprep.subr.mxu0 0.0
        %807 = vmatpush1.msra.mxu0 %v769
        %808 = vmatprep.subr.mxu0 0.0
        %809 = vmatpush1.msra.mxu0 %v768
        %810 = vmatprep.subr.mxu0 0.0
        %811 = vmatpush1.msra.mxu0 %v767
        %812 = vmatprep.subr.mxu0 0.0
        %813 = vmatpush1.msra.mxu0 %v766
        %814 = vmatprep.subr.mxu0 0.0
        %815 = vmatpush2.msra.mxu0 0.0
        %816 = vmatprep.subr.mxu0 0.0
        %817 = vmatpush2.msra.mxu0 0.0
        %818 = vmatprep.subr.mxu0 0.0
        %819 = vmatpush2.msra.mxu0 0.0
        %820 = vmatprep.subr.mxu0 0.0
        %821 = vmatpush2.msra.mxu0 0.0
        %822 = vmatprep.subr.mxu0 0.0
        %823 = vmatpush2.msra.mxu0 0.0
        %824 = vmatprep.subr.mxu0 0.0
        %825 = vmatpush2.msra.mxu0 0.0
        %826 = vmatprep.subr.mxu0 0.0
        %827 = vmatpush2.msra.mxu0 0.0
        %828 = vmatprep.subr.mxu0 0.0
        %829 = vmatpush2.msra.mxu0 0.0
        %830 = vmatprep.subr.mxu0 0.0
        %831 = vmatpush2.msra.mxu0 0.0
        %832 = vmatprep.subr.mxu0 0.0
        %833 = vmatpush2.msra.mxu0 0.0
        %834 = vmatprep.subr.mxu0 0.0
        %835 = vmatpush2.msra.mxu0 0.0
        %836 = vmatprep.subr.mxu0 0.0
        %837 = vmatpush2.msra.mxu0 0.0
        %838 = vmatprep.subr.mxu0 0.0
        %839 = vmatpush2.msra.mxu0 0.0
        %840 = vmatprep.subr.mxu0 0.0
        %841 = vmatpush2.msra.mxu0 0.0
        %842 = vmatprep.subr.mxu0 0.0
        %843 = vmatpush2.msra.mxu0 0.0
        %844 = vmatprep.subr.mxu0 0.0
        %845 = vmatpush2.msra.mxu0 0.0
        %846 = vmatprep.mubr.f32.mxu0 0.0
        %847 = vmatmul.mubr.f32.gmra.mxu0 %v399
        %v848 = vpop.f32.mrf.mxu0
        %v849 = vadd.f32 0.0, %v848
        %v850 = vpop.f32.mrf.mxu0
        %851 = vdwg.mxu0
        %852 = vmatprep.subr.mxu0 0.0
        %853 = vmatpush1.msra.mxu0 %v765
        %854 = vmatprep.subr.mxu0 0.0
        %855 = vmatpush1.msra.mxu0 %v764
        %856 = vmatprep.subr.mxu0 0.0
        %857 = vmatpush1.msra.mxu0 %v763
        %858 = vmatprep.subr.mxu0 0.0
        %859 = vmatpush1.msra.mxu0 %v762
        %860 = vmatprep.subr.mxu0 0.0
        %861 = vmatpush1.msra.mxu0 %v761
        %862 = vmatprep.subr.mxu0 0.0
        %863 = vmatpush1.msra.mxu0 %v760
        %864 = vmatprep.subr.mxu0 0.0
        %865 = vmatpush1.msra.mxu0 %v759
        %866 = vmatprep.subr.mxu0 0.0
        %867 = vmatpush1.msra.mxu0 %v758
        %868 = vmatprep.subr.mxu0 0.0
        %869 = vmatpush1.msra.mxu0 %v757
        %870 = vmatprep.subr.mxu0 0.0
        %871 = vmatpush1.msra.mxu0 %v756
        %872 = vmatprep.subr.mxu0 0.0
        %873 = vmatpush1.msra.mxu0 %v755
        %874 = vmatprep.subr.mxu0 0.0
        %875 = vmatpush1.msra.mxu0 %v754
        %876 = vmatprep.subr.mxu0 0.0
        %877 = vmatpush1.msra.mxu0 %v753
        %878 = vmatprep.subr.mxu0 0.0
        %879 = vmatpush1.msra.mxu0 %v752
        %880 = vmatprep.subr.mxu0 0.0
        %881 = vmatpush1.msra.mxu0 %v751
        %882 = vmatprep.subr.mxu0 0.0
        %883 = vmatpush1.msra.mxu0 %v750
        %884 = vmatprep.subr.mxu0 0.0
        %885 = vmatpush2.msra.mxu0 0.0
        %886 = vmatprep.subr.mxu0 0.0
        %887 = vmatpush2.msra.mxu0 0.0
        %888 = vmatprep.subr.mxu0 0.0
        %889 = vmatpush2.msra.mxu0 0.0
        %890 = vmatprep.subr.mxu0 0.0
        %891 = vmatpush2.msra.mxu0 0.0
        %892 = vmatprep.subr.mxu0 0.0
        %893 = vmatpush2.msra.mxu0 0.0
        %894 = vmatprep.subr.mxu0 0.0
        %895 = vmatpush2.msra.mxu0 0.0
        %896 = vmatprep.subr.mxu0 0.0
        %897 = vmatpush2.msra.mxu0 0.0
        %898 = vmatprep.subr.mxu0 0.0
        %899 = vmatpush2.msra.mxu0 0.0
        %900 = vmatprep.subr.mxu0 0.0
        %901 = vmatpush2.msra.mxu0 0.0
        %902 = vmatprep.subr.mxu0 0.0
        %903 = vmatpush2.msra.mxu0 0.0
        %904 = vmatprep.subr.mxu0 0.0
        %905 = vmatpush2.msra.mxu0 0.0
        %906 = vmatprep.subr.mxu0 0.0
        %907 = vmatpush2.msra.mxu0 0.0
        %908 = vmatprep.subr.mxu0 0.0
        %909 = vmatpush2.msra.mxu0 0.0
        %910 = vmatprep.subr.mxu0 0.0
        %911 = vmatpush2.msra.mxu0 0.0
        %912 = vmatprep.subr.mxu0 0.0
        %913 = vmatpush2.msra.mxu0 0.0
        %914 = vmatprep.subr.mxu0 0.0
        %915 = vmatpush2.msra.mxu0 0.0
        %916 = vmatprep.mubr.f32.mxu0 0.0
        %917 = vmatmul.mubr.f32.gmra.mxu0 %v398
        %v918 = vpop.f32.mrf.mxu0
        %v919 = vadd.f32 %v849, %v918
        %v920 = vpop.f32.mrf.mxu0
        %921 = vdwg.mxu0
        %922 = vst [vmem:[%s391] sm:$0xff] %v919
      $region60: #{lti_forward_sequence.1} parent=51 // pred_fallthru
        _
      %p923 = scmp.lt.s32.totalorder %s25, 0
      %s924 = scalar_select %p923, %s25, 0
      %p925 = scmp.lt.s32.totalorder %s26, 2
      %s926 = scalar_select %p925, %s26, 2
      %s927 = smul.addr %s924, 3
      %s928 = sadd.s32 %s926, %s927
      %s929 = smul.addr %s928, 8
      %s930 = scalar_lea.vmem %s8, %s929
      %p931 = scmp.lt.s32.totalorder %s25, 0
      %s932 = scalar_select %p931, %s25, 0
      %s933 = smul.addr %s932, 8
      %s934 = scalar_lea.vmem %s9, %s933
      // Predicated region
      $region61: #{lti_forward_sequence.1} parent=51 // pred_check
        %p935 = pneg %p233
      $region62: #{lti_forward_sequence.1} parent=51 // pred_check_branch
        %937 = sbr.rel (%p935) target = $region64
      $region63: #{lti_forward_sequence.1} parent=51 // pred_region
        _
      $region64: #{lti_forward_sequence.1} parent=51 // pred_fallthru
        _
      // Predicated region
      $region65: #{lti_forward_sequence.1} parent=51 // pred_check
        %p938 = pneg %p259
      $region66: #{lti_forward_sequence.1} parent=51 // pred_check_branch
        %940 = sbr.rel (%p938) target = $region68
      $region67: #{lti_forward_sequence.1} parent=51 // pred_region
        _
      $region68: #{lti_forward_sequence.1} parent=51 // pred_fallthru
        _
      // Predicated region
      $region69: #{lti_forward_sequence.1} parent=51 // pred_check
        %p941 = pneg %p259
      $region70: #{lti_forward_sequence.1} parent=51 // pred_check_branch
        %943 = sbr.rel (%p941) target = $region72
      $region71: #{lti_forward_sequence.1} parent=51 // pred_region
        %p944 = scmp.lt.s32.totalorder %s25, 0
        %s945 = scalar_select %p944, %s25, 0
        %s946 = smul.addr %s945, 8
        %s947 = scalar_lea.vmem %s9, %s946
      $region72: #{lti_forward_sequence.1} parent=51 // pred_fallthru
        _
    $region52: #{lti_forward_sequence.1} parent=5 // pred_fallthru
      _
    %p948 = scmp.le.s32.totalorder 2, %s16
    // Predicated region
    $region73: #{lti_forward_sequence.1} parent=5 // pred_check
      %p949 = pneg %p948
    $region74: #{lti_forward_sequence.1} parent=5 // pred_check_branch
      %951 = sbr.rel (%p949) target = $region76
    $region75: #{lti_forward_sequence.1} parent=5 // pred_region
      %s952 = ssub.s32 %s16, 2
      // Predicated region
      $region77: #{lti_forward_sequence.1} parent=75 // pred_check
        %p953 = pneg %p239
      $region78: #{lti_forward_sequence.1} parent=75 // pred_check_branch
        %955 = sbr.rel (%p953) target = $region80
      $region79: #{lti_forward_sequence.1} parent=75 // pred_region
        %p956 = scmp.lt.s32.totalorder %s27, 0
        %s957 = scalar_select %p956, %s27, 0
        %p958 = scmp.lt.s32.totalorder %s28, 2
        %s959 = scalar_select %p958, %s28, 2
        %s960 = smul.addr %s957, 3
        %s961 = sadd.s32 %s959, %s960
        %s962 = smul.addr %s961, 8
        %s963 = scalar_lea.vmem %s8, %s962
      $region80: #{lti_forward_sequence.1} parent=75 // pred_fallthru
        _
    $region76: #{lti_forward_sequence.1} parent=5 // pred_fallthru
      _
  $region6: #{lti_forward_sequence.1} parent=0 // loop_footer
    %s20 = sadd.s32 1, %s16
  $region7: #{lti_forward_sequence.1} parent=0 // loop_footer_branch
    %15 = sbr.rel target = $region3
  $region8: #{lti_forward_sequence.1} parent=0 // loop_exit
    _

</llo_original>
